<compile_context>
chip_gen: v7x
topology: tpu7x:2x2x1
jax: 0.10.0
libtpu: 0.0.40
codegen_flags: <defaults>
</compile_context>

<pallas_src>
import jax
import jax.numpy as jnp
from jax.experimental import pallas as pl
from jax.experimental.pallas import tpu as pltpu


MXU_DTYPE = jnp.bfloat16  # MXU operand dtype (accumulation stays f32)


# ---------------------------------------------------------------------------
# Small helpers
# ---------------------------------------------------------------------------
def _round_up(x, m):
    return (x + m - 1) // m * m


def _choose_tm(m_padded, max_tm=512):
    """Largest lane tile (multiple of 128, <= max_tm) that divides m_padded."""
    t = m_padded // 128
    for d in range(min(t, max_tm // 128), 0, -1):
        if t % d == 0:
            return 128 * d
    return 128


# ---------------------------------------------------------------------------
# Pallas kernels
# ---------------------------------------------------------------------------
def _ws_matmul_bias_relu_kernel(w_ref, p_ref, b_ref, o_ref):
    # w: (C_out, K) bf16   p: (K, TM) bf16   b: (C_out, 1) f32   o: (C_out, TM) f32
    acc = jnp.dot(w_ref[...], p_ref[...], preferred_element_type=jnp.float32)
    o_ref[...] = jnp.maximum(acc + b_ref[...], 0.0)


def ws_matmul_bias_relu(w2, patches, b, max_tm=512):
    """o = relu(w2 @ patches + b[:, None]) with lane-dense output (C_out, M).

    w2: (C_out, K), patches: (K, M), b: (C_out,). K and M are zero-padded to
    multiples of 128; M is tiled over a parallel grid.
    """
    c_out, k = w2.shape
    k2, m = patches.shape
    assert k == k2
    kp = _round_up(k, 128)
    mp = _round_up(m, 128)
    tm = _choose_tm(mp, max_tm)

    w2 = w2.astype(MXU_DTYPE)
    patches = patches.astype(MXU_DTYPE)
    if kp != k:
        w2 = jnp.pad(w2, ((0, 0), (0, kp - k)))
    if kp != k or mp != m:
        patches = jnp.pad(patches, ((0, kp - k), (0, mp - m)))
    b2 = b.reshape(c_out, 1).astype(jnp.float32)

    out = pl.pallas_call(
        _ws_matmul_bias_relu_kernel,
        out_shape=jax.ShapeDtypeStruct((c_out, mp), jnp.float32),
        grid=(mp // tm,),
        in_specs=[
            pl.BlockSpec((c_out, kp), lambda i: (0, 0)),   # weight stationary
            pl.BlockSpec((kp, tm), lambda i: (0, i)),
            pl.BlockSpec((c_out, 1), lambda i: (0, 0)),
        ],
        out_specs=pl.BlockSpec((c_out, tm), lambda i: (0, i)),
        compiler_params=pltpu.CompilerParams(
            dimension_semantics=("parallel",)),
    )(w2, patches, b2)
    return out[:, :m]


def _residual_add_kernel(x_ref, e_ref, o_ref):
    # x: (1, C, HW)  e: (1, 1, HW) -> broadcast over channels in-register.
    o_ref[...] = x_ref[...] + e_ref[...]


def residual_add_broadcast(x3, e3):
    """out[n, c, :] = x[n, c, :] + eps[n, 0, :] without materializing the
    C-times-larger broadcast of eps in HBM."""
    n, c, hw = x3.shape
    return pl.pallas_call(
        _residual_add_kernel,
        out_shape=jax.ShapeDtypeStruct((n, c, hw), jnp.float32),
        grid=(n,),
        in_specs=[
            pl.BlockSpec((1, c, hw), lambda i: (i, 0, 0)),
            pl.BlockSpec((1, 1, hw), lambda i: (i, 0, 0)),
        ],
        out_specs=pl.BlockSpec((1, c, hw), lambda i: (i, 0, 0)),
        compiler_params=pltpu.CompilerParams(
            dimension_semantics=("parallel",)),
    )(x3.astype(jnp.float32), e3.astype(jnp.float32))


# ---------------------------------------------------------------------------
# Conv / ConvTranspose lowering (im2col is XLA glue, GEMM is Pallas)
# ---------------------------------------------------------------------------
def _im2col_cnhw(x, k, stride, pad):
    """x: (C, N, H, W) -> patches (C*k*k, N*Ho*Wo).

    K (row) order is (c, kh, kw) — matches PyTorch weight flattening.
    M (col) order is (n, ho, wo) — so GEMM output reshapes straight to CNHW.
    """
    c, n, h, w = x.shape
    xp = jnp.pad(x, ((0, 0), (0, 0), (pad, pad), (pad, pad)))
    ho = (h + 2 * pad - k) // stride + 1
    wo = (w + 2 * pad - k) // stride + 1
    cols = []
    for kh in range(k):
        for kw in range(k):
            cols.append(
                xp[:, :, kh:kh + stride * ho:stride, kw:kw + stride * wo:stride])
    p = jnp.stack(cols, axis=1)                 # (C, k*k, N, Ho, Wo)
    p = p.reshape(c * k * k, n * ho * wo)
    return p, ho, wo


def conv2d_relu_ws(x_cnhw, w, b, stride, pad):
    """PyTorch nn.Conv2d(C_in,C_out,k,stride,pad)+ReLU on a CNHW activation.
    w: (C_out, C_in, k, k). Returns CNHW output."""
    c_out, c_in, k, _ = w.shape
    _, n, h, wd = x_cnhw.shape
    patches, ho, wo = _im2col_cnhw(x_cnhw.astype(MXU_DTYPE), k, stride, pad)
    w2 = w.reshape(c_out, c_in * k * k)
    y = ws_matmul_bias_relu(w2, patches, b)     # (C_out, N*Ho*Wo)
    return y.reshape(c_out, n, ho, wo)


def _convt_subpixel_weight(w):
    """PyTorch ConvTranspose2d weight (C_in, C_out, 4, 4) ->
    (4*C_out, C_in*9) weight of the equivalent 3x3 stride-1 conv over a pad-1
    input, producing the 4 output sub-pixel phases as extra output channels.

    Derivation (stride=2, pad=1, k=4):  oh = 2*ih - 1 + kh, so output phase
    r = oh % 2 uses kernel rows kh = 3 + r - 2*a3 at patch row offset a3
    (original row ih = m - 1 + a3); taps with kh outside [0,3] are zero.
    Same decomposition along the width axis.
    """
    c_in, c_out, k, _ = w.shape
    r = jnp.arange(2).reshape(2, 1, 1, 1)
    c = jnp.arange(2).reshape(1, 2, 1, 1)
    a3 = jnp.arange(3).reshape(1, 1, 3, 1)
    b3 = jnp.arange(3).reshape(1, 1, 1, 3)
    kh = 3 + r - 2 * a3                                   # (2,2,3,3)
    kw = 3 + c - 2 * b3
    valid = ((kh >= 0) & (kh <= 3) & (kw >= 0) & (kw <= 3))
    khc = jnp.clip(kh, 0, k - 1)
    kwc = jnp.clip(kw, 0, k - 1)
    wg = w[:, :, khc, kwc]                                # (C_in, C_out, 2,2,3,3)
    wg = wg * valid.astype(w.dtype)
    w3 = jnp.transpose(wg, (2, 3, 1, 0, 4, 5))            # (r, c, C_out, C_in, 3, 3)
    return w3.reshape(4 * c_out, c_in * 9)


def conv_transpose2d_relu_subpixel(x_cnhw, w, b):
    """PyTorch nn.ConvTranspose2d(C_in,C_out,4,2,1)+ReLU on a CNHW activation
    via the 4-phase sub-pixel decomposition (single lane-dense GEMM)."""
    c_in, c_out, k, _ = w.shape
    assert k == 4
    _, n, h, wd = x_cnhw.shape
    w3 = _convt_subpixel_weight(w)                                   # (4*C_out, C_in*9)
    patches, ho, wo = _im2col_cnhw(x_cnhw.astype(MXU_DTYPE), 3, 1, 1)  # ho=h, wo=wd
    b4 = jnp.tile(b, 4)                                              # bias per (phase, co)
    y = ws_matmul_bias_relu(w3, patches, b4)                         # (4*C_out, N*H*W)
    y = y.reshape(2, 2, c_out, n, h, wd)                             # (r, c, co, n, m, p)
    y = jnp.transpose(y, (2, 3, 4, 0, 5, 1))                         # (co, n, m, r, p, c)
    return y.reshape(c_out, n, 2 * h, 2 * wd)                        # interleave phases


# ---------------------------------------------------------------------------
# LeNet_Generator forward
# ---------------------------------------------------------------------------
def lenet_generator_forward(x, params):
    n, c, h, w = x.shape
    xc = jnp.transpose(x, (1, 0, 2, 3))                                  # CNHW, once
    h1 = conv2d_relu_ws(xc, params["w1"], params["b1"], stride=2, pad=1)  # (6, N, H/2, W/2)
    h2 = conv2d_relu_ws(h1, params["w2"], params["b2"], stride=2, pad=1)  # (28, N, H/4, W/4)
    h3 = conv_transpose2d_relu_subpixel(h2, params["wt1"], params["bt1"])  # (6, N, H/2, W/2)
    eps = conv_transpose2d_relu_subpixel(h3, params["wt2"], params["bt2"])  # (1, N, H, W)

    x3 = x.reshape(n, c, h * w)
    e3 = eps.reshape(n, 1, h * w)          # leading channel dim is 1 -> pure reshape
    out = residual_add_broadcast(x3, e3)   # in-kernel channel broadcast
    return out.reshape(n, c, h, w)


# ---------------------------------------------------------------------------
# Pure-JAX reference (for a runtime sanity check)
# ---------------------------------------------------------------------------
def _reference_forward(x, params):
    dn = ("NCHW", "OIHW", "NCHW")

    def conv(xx, w, b, stride, pad):
        y = jax.lax.conv_general_dilated(
            xx, w, (stride, stride), [(pad, pad), (pad, pad)], dimension_numbers=dn)
        return jax.nn.relu(y + b.reshape(1, -1, 1, 1))

    def convt(xx, w, b, stride, pad):
        k = w.shape[-1]
        wc = jnp.flip(w, (2, 3)).transpose(1, 0, 2, 3)
        y = jax.lax.conv_general_dilated(
            xx, wc, (1, 1), [(k - 1 - pad, k - 1 - pad)] * 2,
            lhs_dilation=(stride, stride), dimension_numbers=dn)
        return jax.nn.relu(y + b.reshape(1, -1, 1, 1))

    hh = conv(x, params["w1"], params["b1"], 2, 1)
    hh = conv(hh, params["w2"], params["b2"], 2, 1)
    hh = convt(hh, params["wt1"], params["bt1"], 2, 1)
    eps = convt(hh, params["wt2"], params["bt2"], 2, 1)
    return x + eps


def init_params(key, in_channels):
    ks = jax.random.split(key, 8)
    s = 0.1
    return {
        # Conv2d weights: (C_out, C_in, k, k)
        "w1": s * jax.random.normal(ks[0], (6, in_channels, 4, 4), jnp.float32),
        "b1": s * jax.random.normal(ks[1], (6,), jnp.float32),
        "w2": s * jax.random.normal(ks[2], (28, 6, 4, 4), jnp.float32),
        "b2": s * jax.random.normal(ks[3], (28,), jnp.float32),
        # ConvTranspose2d weights: (C_in, C_out, k, k)
        "wt1": s * jax.random.normal(ks[4], (28, 6, 4, 4), jnp.float32),
        "bt1": s * jax.random.normal(ks[5], (6,), jnp.float32),
        "wt2": s * jax.random.normal(ks[6], (6, 1, 4, 4), jnp.float32),
        "bt2": s * jax.random.normal(ks[7], (1,), jnp.float32),
    }


if __name__ == "__main__":
    key = jax.random.PRNGKey(0)
    k_x, k_p = jax.random.split(key)

    in_channels = 4
    x = jax.random.normal(k_x, (2, in_channels, 16, 16), jnp.float32)  # NCHW
    params = init_params(k_p, in_channels)

    fwd = jax.jit(lenet_generator_forward)
    out = fwd(x, params)
    jax.block_until_ready(out)

    assert out.shape == x.shape, (out.shape, x.shape)
    assert out.dtype == jnp.float32

    # Loose tolerance: MXU operands are bf16 (f32 accumulate) per perf review.
    ref = jax.jit(_reference_forward)(x, params)
    err = float(jnp.max(jnp.abs(out - ref)))
    assert err < 3e-2, f"max abs err vs reference = {err}"

    print("KERNEL_OK")
</pallas_src>

<mosaic_0001>
module attributes {stable_mosaic.version = 11 : i64} {
  func.func @_ws_matmul_bias_relu_kernel(%arg0: i32, %arg1: memref<6x128xbf16, #tpu.memory_space<vmem>>, %arg2: memref<128x128xbf16, #tpu.memory_space<vmem>>, %arg3: memref<6x1xf32, #tpu.memory_space<vmem>>, %arg4: memref<6x128xf32, #tpu.memory_space<vmem>>) attributes {dimension_semantics = [#tpu.dimension_semantics<parallel>], iteration_bounds = array<i64: 1>, scalar_prefetch = 0 : i64, scratch_operands = 0 : i64, tpu.core_type = #tpu.core_type<tc>, window_params = [{pipeline_mode = #tpu.pipeline_mode<synchronous>, transform_indices = @transform_0, window_bounds = array<i64: 6, 128>}, {transform_indices = @transform_1, window_bounds = array<i64: 128, 128>}, {pipeline_mode = #tpu.pipeline_mode<synchronous>, transform_indices = @transform_2, window_bounds = array<i64: 6, 1>}, {transform_indices = @transform_3, window_bounds = array<i64: 6, 128>}]} {
    %c0 = arith.constant 0 : index
    %c0_0 = arith.constant 0 : index
    %0 = vector.load %arg1[%c0, %c0_0] : memref<6x128xbf16, #tpu.memory_space<vmem>>, vector<6x128xbf16>
    %c0_1 = arith.constant 0 : index
    %c0_2 = arith.constant 0 : index
    %1 = vector.load %arg2[%c0_1, %c0_2] : memref<128x128xbf16, #tpu.memory_space<vmem>>, vector<128x128xbf16>
    %cst = arith.constant dense<0.000000e+00> : vector<6x128xf32>
    %2 = tpu.matmul %0, %1, %cst {dimension_numbers = #tpu.dot_dimension_numbers<[1], [0], [0], [1], [0, 0, 1, 1], [], []>} : vector<6x128xbf16>, vector<128x128xbf16>, vector<6x128xf32> -> vector<6x128xf32>
    %c0_3 = arith.constant 0 : index
    %c0_4 = arith.constant 0 : index
    %3 = vector.load %arg3[%c0_3, %c0_4] : memref<6x1xf32, #tpu.memory_space<vmem>>, vector<6x1xf32>
    %4 = vector.broadcast %3 : vector<6x1xf32> to vector<6x128xf32>
    %5 = arith.addf %2, %4 : vector<6x128xf32>
    %cst_5 = arith.constant 0.000000e+00 : f32
    %6 = vector.broadcast %cst_5 : f32 to vector<6x128xf32>
    %7 = arith.maximumf %5, %6 : vector<6x128xf32>
    %c0_6 = arith.constant 0 : index
    %c0_7 = arith.constant 0 : index
    %8 = vector.load %arg4[%c0_6, %c0_7] : memref<6x128xf32, #tpu.memory_space<vmem>>, vector<6x128xf32>
    tpu.vector_store %arg4[%c0_6, %c0_7], %7 {strides = array<i32>} : memref<6x128xf32, #tpu.memory_space<vmem>>, vector<6x128xf32>,
    return
  }
  func.func @transform_0(%arg0: i32) -> (i32, i32) {
    %c0_i32 = arith.constant 0 : i32
    %c0_i32_0 = arith.constant 0 : i32
    %c0_i32_1 = arith.constant 0 : i32
    return %c0_i32, %c0_i32_0 : i32, i32
  }
  func.func @transform_1(%arg0: i32) -> (i32, i32) {
    %c0_i32 = arith.constant 0 : i32
    %c0_i32_0 = arith.constant 0 : i32
    return %c0_i32, %arg0 : i32, i32
  }
  func.func @transform_2(%arg0: i32) -> (i32, i32) {
    %c0_i32 = arith.constant 0 : i32
    %c0_i32_0 = arith.constant 0 : i32
    %c0_i32_1 = arith.constant 0 : i32
    return %c0_i32, %c0_i32_0 : i32, i32
  }
  func.func @transform_3(%arg0: i32) -> (i32, i32) {
    %c0_i32 = arith.constant 0 : i32
    %c0_i32_0 = arith.constant 0 : i32
    return %c0_i32, %arg0 : i32, i32
  }
}

module attributes {stable_mosaic.version = 11 : i64} {
  func.func @_ws_matmul_bias_relu_kernel(%arg0: i32, %arg1: memref<28x128xbf16, #tpu.memory_space<vmem>>, %arg2: memref<128x128xbf16, #tpu.memory_space<vmem>>, %arg3: memref<28x1xf32, #tpu.memory_space<vmem>>, %arg4: memref<28x128xf32, #tpu.memory_space<vmem>>) attributes {dimension_semantics = [#tpu.dimension_semantics<parallel>], iteration_bounds = array<i64: 1>, scalar_prefetch = 0 : i64, scratch_operands = 0 : i64, tpu.core_type = #tpu.core_type<tc>, window_params = [{pipeline_mode = #tpu.pipeline_mode<synchronous>, transform_indices = @transform_0, window_bounds = array<i64: 28, 128>}, {transform_indices = @transform_1, window_bounds = array<i64: 128, 128>}, {pipeline_mode = #tpu.pipeline_mode<synchronous>, transform_indices = @transform_2, window_bounds = array<i64: 28, 1>}, {transform_indices = @transform_3, window_bounds = array<i64: 28, 128>}]} {
    %c0 = arith.constant 0 : index
    %c0_0 = arith.constant 0 : index
    %0 = vector.load %arg1[%c0, %c0_0] : memref<28x128xbf16, #tpu.memory_space<vmem>>, vector<28x128xbf16>
    %c0_1 = arith.constant 0 : index
    %c0_2 = arith.constant 0 : index
    %1 = vector.load %arg2[%c0_1, %c0_2] : memref<128x128xbf16, #tpu.memory_space<vmem>>, vector<128x128xbf16>
    %cst = arith.constant dense<0.000000e+00> : vector<28x128xf32>
    %2 = tpu.matmul %0, %1, %cst {dimension_numbers = #tpu.dot_dimension_numbers<[1], [0], [0], [1], [0, 0, 1, 1], [], []>} : vector<28x128xbf16>, vector<128x128xbf16>, vector<28x128xf32> -> vector<28x128xf32>
    %c0_3 = arith.constant 0 : index
    %c0_4 = arith.constant 0 : index
    %3 = vector.load %arg3[%c0_3, %c0_4] : memref<28x1xf32, #tpu.memory_space<vmem>>, vector<28x1xf32>
    %4 = vector.broadcast %3 : vector<28x1xf32> to vector<28x128xf32>
    %5 = arith.addf %2, %4 : vector<28x128xf32>
    %cst_5 = arith.constant 0.000000e+00 : f32
    %6 = vector.broadcast %cst_5 : f32 to vector<28x128xf32>
    %7 = arith.maximumf %5, %6 : vector<28x128xf32>
    %c0_6 = arith.constant 0 : index
    %c0_7 = arith.constant 0 : index
    %8 = vector.load %arg4[%c0_6, %c0_7] : memref<28x128xf32, #tpu.memory_space<vmem>>, vector<28x128xf32>
    tpu.vector_store %arg4[%c0_6, %c0_7], %7 {strides = array<i32>} : memref<28x128xf32, #tpu.memory_space<vmem>>, vector<28x128xf32>,
    return
  }
  func.func @transform_0(%arg0: i32) -> (i32, i32) {
    %c0_i32 = arith.constant 0 : i32
    %c0_i32_0 = arith.constant 0 : i32
    %c0_i32_1 = arith.constant 0 : i32
    return %c0_i32, %c0_i32_0 : i32, i32
  }
  func.func @transform_1(%arg0: i32) -> (i32, i32) {
    %c0_i32 = arith.constant 0 : i32
    %c0_i32_0 = arith.constant 0 : i32
    return %c0_i32, %arg0 : i32, i32
  }
  func.func @transform_2(%arg0: i32) -> (i32, i32) {
    %c0_i32 = arith.constant 0 : i32
    %c0_i32_0 = arith.constant 0 : i32
    %c0_i32_1 = arith.constant 0 : i32
    return %c0_i32, %c0_i32_0 : i32, i32
  }
  func.func @transform_3(%arg0: i32) -> (i32, i32) {
    %c0_i32 = arith.constant 0 : i32
    %c0_i32_0 = arith.constant 0 : i32
    return %c0_i32, %arg0 : i32, i32
  }
}

module attributes {stable_mosaic.version = 11 : i64} {
  func.func @_ws_matmul_bias_relu_kernel(%arg0: i32, %arg1: memref<24x256xbf16, #tpu.memory_space<vmem>>, %arg2: memref<256x128xbf16, #tpu.memory_space<vmem>>, %arg3: memref<24x1xf32, #tpu.memory_space<vmem>>, %arg4: memref<24x128xf32, #tpu.memory_space<vmem>>) attributes {dimension_semantics = [#tpu.dimension_semantics<parallel>], iteration_bounds = array<i64: 1>, scalar_prefetch = 0 : i64, scratch_operands = 0 : i64, tpu.core_type = #tpu.core_type<tc>, window_params = [{pipeline_mode = #tpu.pipeline_mode<synchronous>, transform_indices = @transform_0, window_bounds = array<i64: 24, 256>}, {transform_indices = @transform_1, window_bounds = array<i64: 256, 128>}, {pipeline_mode = #tpu.pipeline_mode<synchronous>, transform_indices = @transform_2, window_bounds = array<i64: 24, 1>}, {transform_indices = @transform_3, window_bounds = array<i64: 24, 128>}]} {
    %c0 = arith.constant 0 : index
    %c0_0 = arith.constant 0 : index
    %0 = vector.load %arg1[%c0, %c0_0] : memref<24x256xbf16, #tpu.memory_space<vmem>>, vector<24x256xbf16>
    %c0_1 = arith.constant 0 : index
    %c0_2 = arith.constant 0 : index
    %1 = vector.load %arg2[%c0_1, %c0_2] : memref<256x128xbf16, #tpu.memory_space<vmem>>, vector<256x128xbf16>
    %cst = arith.constant dense<0.000000e+00> : vector<24x128xf32>
    %2 = tpu.matmul %0, %1, %cst {dimension_numbers = #tpu.dot_dimension_numbers<[1], [0], [0], [1], [0, 0, 1, 1], [], []>} : vector<24x256xbf16>, vector<256x128xbf16>, vector<24x128xf32> -> vector<24x128xf32>
    %c0_3 = arith.constant 0 : index
    %c0_4 = arith.constant 0 : index
    %3 = vector.load %arg3[%c0_3, %c0_4] : memref<24x1xf32, #tpu.memory_space<vmem>>, vector<24x1xf32>
    %4 = vector.broadcast %3 : vector<24x1xf32> to vector<24x128xf32>
    %5 = arith.addf %2, %4 : vector<24x128xf32>
    %cst_5 = arith.constant 0.000000e+00 : f32
    %6 = vector.broadcast %cst_5 : f32 to vector<24x128xf32>
    %7 = arith.maximumf %5, %6 : vector<24x128xf32>
    %c0_6 = arith.constant 0 : index
    %c0_7 = arith.constant 0 : index
    %8 = vector.load %arg4[%c0_6, %c0_7] : memref<24x128xf32, #tpu.memory_space<vmem>>, vector<24x128xf32>
    tpu.vector_store %arg4[%c0_6, %c0_7], %7 {strides = array<i32>} : memref<24x128xf32, #tpu.memory_space<vmem>>, vector<24x128xf32>,
    return
  }
  func.func @transform_0(%arg0: i32) -> (i32, i32) {
    %c0_i32 = arith.constant 0 : i32
    %c0_i32_0 = arith.constant 0 : i32
    %c0_i32_1 = arith.constant 0 : i32
    return %c0_i32, %c0_i32_0 : i32, i32
  }
  func.func @transform_1(%arg0: i32) -> (i32, i32) {
    %c0_i32 = arith.constant 0 : i32
    %c0_i32_0 = arith.constant 0 : i32
    return %c0_i32, %arg0 : i32, i32
  }
  func.func @transform_2(%arg0: i32) -> (i32, i32) {
    %c0_i32 = arith.constant 0 : i32
    %c0_i32_0 = arith.constant 0 : i32
    %c0_i32_1 = arith.constant 0 : i32
    return %c0_i32, %c0_i32_0 : i32, i32
  }
  func.func @transform_3(%arg0: i32) -> (i32, i32) {
    %c0_i32 = arith.constant 0 : i32
    %c0_i32_0 = arith.constant 0 : i32
    return %c0_i32, %arg0 : i32, i32
  }
}

module attributes {stable_mosaic.version = 11 : i64} {
  func.func @_ws_matmul_bias_relu_kernel(%arg0: i32, %arg1: memref<4x128xbf16, #tpu.memory_space<vmem>>, %arg2: memref<128x128xbf16, #tpu.memory_space<vmem>>, %arg3: memref<4x1xf32, #tpu.memory_space<vmem>>, %arg4: memref<4x128xf32, #tpu.memory_space<vmem>>) attributes {dimension_semantics = [#tpu.dimension_semantics<parallel>], iteration_bounds = array<i64: 1>, scalar_prefetch = 0 : i64, scratch_operands = 0 : i64, tpu.core_type = #tpu.core_type<tc>, window_params = [{pipeline_mode = #tpu.pipeline_mode<synchronous>, transform_indices = @transform_0, window_bounds = array<i64: 4, 128>}, {transform_indices = @transform_1, window_bounds = array<i64: 128, 128>}, {pipeline_mode = #tpu.pipeline_mode<synchronous>, transform_indices = @transform_2, window_bounds = array<i64: 4, 1>}, {transform_indices = @transform_3, window_bounds = array<i64: 4, 128>}]} {
    %c0 = arith.constant 0 : index
    %c0_0 = arith.constant 0 : index
    %0 = vector.load %arg1[%c0, %c0_0] : memref<4x128xbf16, #tpu.memory_space<vmem>>, vector<4x128xbf16>
    %c0_1 = arith.constant 0 : index
    %c0_2 = arith.constant 0 : index
    %1 = vector.load %arg2[%c0_1, %c0_2] : memref<128x128xbf16, #tpu.memory_space<vmem>>, vector<128x128xbf16>
    %cst = arith.constant dense<0.000000e+00> : vector<4x128xf32>
    %2 = tpu.matmul %0, %1, %cst {dimension_numbers = #tpu.dot_dimension_numbers<[1], [0], [0], [1], [0, 0, 1, 1], [], []>} : vector<4x128xbf16>, vector<128x128xbf16>, vector<4x128xf32> -> vector<4x128xf32>
    %c0_3 = arith.constant 0 : index
    %c0_4 = arith.constant 0 : index
    %3 = vector.load %arg3[%c0_3, %c0_4] : memref<4x1xf32, #tpu.memory_space<vmem>>, vector<4x1xf32>
    %4 = vector.broadcast %3 : vector<4x1xf32> to vector<4x128xf32>
    %5 = arith.addf %2, %4 : vector<4x128xf32>
    %cst_5 = arith.constant 0.000000e+00 : f32
    %6 = vector.broadcast %cst_5 : f32 to vector<4x128xf32>
    %7 = arith.maximumf %5, %6 : vector<4x128xf32>
    %c0_6 = arith.constant 0 : index
    %c0_7 = arith.constant 0 : index
    %8 = vector.load %arg4[%c0_6, %c0_7] : memref<4x128xf32, #tpu.memory_space<vmem>>, vector<4x128xf32>
    tpu.vector_store %arg4[%c0_6, %c0_7], %7 {strides = array<i32>} : memref<4x128xf32, #tpu.memory_space<vmem>>, vector<4x128xf32>,
    return
  }
  func.func @transform_0(%arg0: i32) -> (i32, i32) {
    %c0_i32 = arith.constant 0 : i32
    %c0_i32_0 = arith.constant 0 : i32
    %c0_i32_1 = arith.constant 0 : i32
    return %c0_i32, %c0_i32_0 : i32, i32
  }
  func.func @transform_1(%arg0: i32) -> (i32, i32) {
    %c0_i32 = arith.constant 0 : i32
    %c0_i32_0 = arith.constant 0 : i32
    return %c0_i32, %arg0 : i32, i32
  }
  func.func @transform_2(%arg0: i32) -> (i32, i32) {
    %c0_i32 = arith.constant 0 : i32
    %c0_i32_0 = arith.constant 0 : i32
    %c0_i32_1 = arith.constant 0 : i32
    return %c0_i32, %c0_i32_0 : i32, i32
  }
  func.func @transform_3(%arg0: i32) -> (i32, i32) {
    %c0_i32 = arith.constant 0 : i32
    %c0_i32_0 = arith.constant 0 : i32
    return %c0_i32, %arg0 : i32, i32
  }
}

module attributes {stable_mosaic.version = 11 : i64} {
  func.func @_residual_add_kernel(%arg0: i32, %arg1: memref<1x4x256xf32, #tpu.memory_space<vmem>>, %arg2: memref<1x1x256xf32, #tpu.memory_space<vmem>>, %arg3: memref<1x4x256xf32, #tpu.memory_space<vmem>>) attributes {dimension_semantics = [#tpu.dimension_semantics<parallel>], iteration_bounds = array<i64: 2>, scalar_prefetch = 0 : i64, scratch_operands = 0 : i64, tpu.core_type = #tpu.core_type<tc>, window_params = [{transform_indices = @transform_0, window_bounds = array<i64: 1, 4, 256>}, {transform_indices = @transform_1, window_bounds = array<i64: 1, 1, 256>}, {transform_indices = @transform_2, window_bounds = array<i64: 1, 4, 256>}]} {
    %c0 = arith.constant 0 : index
    %c0_0 = arith.constant 0 : index
    %c0_1 = arith.constant 0 : index
    %0 = vector.load %arg1[%c0, %c0_0, %c0_1] : memref<1x4x256xf32, #tpu.memory_space<vmem>>, vector<1x4x256xf32>
    %c0_2 = arith.constant 0 : index
    %c0_3 = arith.constant 0 : index
    %c0_4 = arith.constant 0 : index
    %1 = vector.load %arg2[%c0_2, %c0_3, %c0_4] : memref<1x1x256xf32, #tpu.memory_space<vmem>>, vector<1x1x256xf32>
    %2 = vector.broadcast %1 : vector<1x1x256xf32> to vector<1x4x256xf32>
    %3 = arith.addf %0, %2 : vector<1x4x256xf32>
    %c0_5 = arith.constant 0 : index
    %c0_6 = arith.constant 0 : index
    %c0_7 = arith.constant 0 : index
    %4 = vector.load %arg3[%c0_5, %c0_6, %c0_7] : memref<1x4x256xf32, #tpu.memory_space<vmem>>, vector<1x4x256xf32>
    tpu.vector_store %arg3[%c0_5, %c0_6, %c0_7], %3 {strides = array<i32>} : memref<1x4x256xf32, #tpu.memory_space<vmem>>, vector<1x4x256xf32>,
    return
  }
  func.func @transform_0(%arg0: i32) -> (i32, i32, i32) {
    %c0_i32 = arith.constant 0 : i32
    %c0_i32_0 = arith.constant 0 : i32
    %c0_i32_1 = arith.constant 0 : i32
    return %arg0, %c0_i32, %c0_i32_0 : i32, i32, i32
  }
  func.func @transform_1(%arg0: i32) -> (i32, i32, i32) {
    %c0_i32 = arith.constant 0 : i32
    %c0_i32_0 = arith.constant 0 : i32
    %c0_i32_1 = arith.constant 0 : i32
    return %arg0, %c0_i32, %c0_i32_0 : i32, i32, i32
  }
  func.func @transform_2(%arg0: i32) -> (i32, i32, i32) {
    %c0_i32 = arith.constant 0 : i32
    %c0_i32_0 = arith.constant 0 : i32
    %c0_i32_1 = arith.constant 0 : i32
    return %arg0, %c0_i32, %c0_i32_0 : i32, i32, i32
  }
}

</mosaic_0001>

<llo_original>
// kernel: lenet_generator_forward.5
$region0: #{lenet_generator_forward.5}
  #allocation0 [shape = 'u32[]', space=smem, size = 0x4, offset = 0x4, fixed_abs, tag = 'smem constant byte address 0x4 - core index']
  #allocation1 [shape = 'u32[144,128]{1,0:T(1,128)}', space=vmem, size = 0x12000, scoped, tag = 'internal scratch']
  %s0 = inlined_call_operand.vmem [shape: bf16[6,128], index: 0, kind: input, shape index: {}]
  %s1 = inlined_call_operand.vmem [shape: bf16[128,128], index: 1, kind: input, shape index: {}]
  %s2 = inlined_call_operand.vmem [shape: f32[6,1], index: 2, kind: input, shape index: {}]
  %s3 = inlined_call_operand.vmem [shape: f32[6,128], index: 3, kind: output, shape index: {}]
  %s4 = sld [smem:[#allocation0]]
  $region22: #{lenet_generator_forward.5} parent=0
    _
  %s6 = ssub.s32 1, %s4
  %s7 = scalar_select 0, %s6, %s4
  // Predicated region
  $region2: #{lenet_generator_forward.5} parent=0 // pred_check
    _
  $region3: #{lenet_generator_forward.5} parent=0 // pred_check_branch
    %9 = sbr.rel (0) target = $region5
  $region4: #{lenet_generator_forward.5} parent=0 // pred_region
    _
  $region5: #{lenet_generator_forward.5} parent=0 // pred_fallthru
    _
  // Predicated region
  $region6: #{lenet_generator_forward.5} parent=0 // pred_check
    _
  $region7: #{lenet_generator_forward.5} parent=0 // pred_check_branch
    %11 = sbr.rel (0) target = $region9
  $region8: #{lenet_generator_forward.5} parent=0 // pred_region
    _
  $region9: #{lenet_generator_forward.5} parent=0 // pred_fallthru
    _
  // Predicated region
  $region10: #{lenet_generator_forward.5} parent=0 // pred_check
    _
  $region11: #{lenet_generator_forward.5} parent=0 // pred_check_branch
    %13 = sbr.rel (0) target = $region13
  $region12: #{lenet_generator_forward.5} parent=0 // pred_region
    _
  $region13: #{lenet_generator_forward.5} parent=0 // pred_fallthru
    _
  %v15 = vld [vmem:[%s0] sm:$0x7]
  %v16 = vld [vmem:[%s1] sm:$0xf]
  %v17 = vld [vmem:[%s1 + $0x4] sm:$0xf]
  %v18 = vld [vmem:[%s1 + $0x8] sm:$0xf]
  %v19 = vld [vmem:[%s1 + $0xc] sm:$0xf]
  %v20 = vld [vmem:[%s1 + $0x10] sm:$0xf]
  %v21 = vld [vmem:[%s1 + $0x14] sm:$0xf]
  %v22 = vld [vmem:[%s1 + $0x18] sm:$0xf]
  %v23 = vld [vmem:[%s1 + $0x1c] sm:$0xf]
  %v24 = vld [vmem:[%s1 + $0x20] sm:$0xf]
  %v25 = vld [vmem:[%s1 + $0x24] sm:$0xf]
  %v26 = vld [vmem:[%s1 + $0x28] sm:$0xf]
  %v27 = vld [vmem:[%s1 + $0x2c] sm:$0xf]
  %v28 = vld [vmem:[%s1 + $0x30] sm:$0xf]
  %v29 = vld [vmem:[%s1 + $0x34] sm:$0xf]
  %v30 = vld [vmem:[%s1 + $0x38] sm:$0xf]
  %v31 = vld [vmem:[%s1 + $0x3c] sm:$0xf]
  %v32 = vld [vmem:[%s2] sm:$0x3f]
  %34 = vset.pattern.permute.xlu0 0
  %35 = vperm.xlu0 %34, %v32
  %v36 = vpop.permute.xlu0 %35
  %v54 = vunpack.c.l.b16 %v16
  %v55 = vunpack.c.l.b16 %v17
  %v56 = vunpack.c.l.b16 %v18
  %v57 = vunpack.c.l.b16 %v19
  %v58 = vunpack.c.l.b16 %v20
  %v59 = vunpack.c.l.b16 %v21
  %v60 = vunpack.c.l.b16 %v22
  %v61 = vunpack.c.l.b16 %v23
  %v62 = vunpack.c.l.b16 %v24
  %v63 = vunpack.c.l.b16 %v25
  %v64 = vunpack.c.l.b16 %v26
  %v65 = vunpack.c.l.b16 %v27
  %v66 = vunpack.c.l.b16 %v28
  %v67 = vunpack.c.l.b16 %v29
  %v68 = vunpack.c.l.b16 %v30
  %v69 = vunpack.c.l.b16 %v31
  %v70 = vpack.c.b16 %v55, %v54
  %v71 = vpack.c.b16 %v57, %v56
  %v72 = vpack.c.b16 %v59, %v58
  %v73 = vpack.c.b16 %v61, %v60
  %v74 = vpack.c.b16 %v63, %v62
  %v75 = vpack.c.b16 %v65, %v64
  %v76 = vpack.c.b16 %v67, %v66
  %v77 = vpack.c.b16 %v69, %v68
  %86 = vmatprep.subr.bf16.mxu0 0
  %87 = vmatpush1.bf16.msra.mxu0 %v70
  %88 = vmatprep.subr.bf16.mxu0 0
  %89 = vmatpush1.bf16.msra.mxu0 %v71
  %90 = vmatprep.subr.bf16.mxu0 0
  %91 = vmatpush1.bf16.msra.mxu0 %v72
  %92 = vmatprep.subr.bf16.mxu0 0
  %93 = vmatpush1.bf16.msra.mxu0 %v73
  %94 = vmatprep.subr.bf16.mxu0 0
  %95 = vmatpush1.bf16.msra.mxu0 %v74
  %96 = vmatprep.subr.bf16.mxu0 0
  %97 = vmatpush1.bf16.msra.mxu0 %v75
  %98 = vmatprep.subr.bf16.mxu0 0
  %99 = vmatpush1.bf16.msra.mxu0 %v76
  %100 = vmatprep.subr.bf16.mxu0 0
  %101 = vmatpush1.bf16.msra.mxu0 %v77
  %102 = vmatprep.subr.bf16.mxu0 0
  %103 = vmatpush1.bf16.msra.mxu0 0
  %104 = vmatprep.subr.bf16.mxu0 0
  %105 = vmatpush1.bf16.msra.mxu0 0
  %106 = vmatprep.subr.bf16.mxu0 0
  %107 = vmatpush1.bf16.msra.mxu0 0
  %108 = vmatprep.subr.bf16.mxu0 0
  %109 = vmatpush1.bf16.msra.mxu0 0
  %110 = vmatprep.subr.bf16.mxu0 0
  %111 = vmatpush1.bf16.msra.mxu0 0
  %112 = vmatprep.subr.bf16.mxu0 0
  %113 = vmatpush1.bf16.msra.mxu0 0
  %114 = vmatprep.subr.bf16.mxu0 0
  %115 = vmatpush1.bf16.msra.mxu0 0
  %116 = vmatprep.subr.bf16.mxu0 0
  %117 = vmatpush1.bf16.msra.mxu0 0
  %118 = vmatprep.mubr.bf16.mxu0 0
  %119 = vmatmul.mubr.bf16.gmra.mrb[0].mxu0 %v15
  %v120 = vpop.f32.mrb[0].mxu0
  %v121 = vadd.f32 %v36, %v120
  %v122 = vpop.f32.mrb[0].mxu0
  %v123 = vpop.f32.mrb[0].mxu0
  %v124 = vpop.f32.mrb[0].mxu0
  %125 = vdwg.mxu0
  %v126 = vmax.f32 %v121, 0.0
  %127 = vst [vmem:[%s3] sm:$0x3f] %v126
  // Predicated region
  $region14: #{lenet_generator_forward.5} parent=0 // pred_check
    _
  $region15: #{lenet_generator_forward.5} parent=0 // pred_check_branch
    %129 = sbr.rel (0) target = $region17
  $region16: #{lenet_generator_forward.5} parent=0 // pred_region
    _
  $region17: #{lenet_generator_forward.5} parent=0 // pred_fallthru
    _
  // Predicated region
  $region18: #{lenet_generator_forward.5} parent=0 // pred_check
    _
  $region19: #{lenet_generator_forward.5} parent=0 // pred_check_branch
    %131 = sbr.rel (0) target = $region21
  $region20: #{lenet_generator_forward.5} parent=0 // pred_region
    _
  $region21: #{lenet_generator_forward.5} parent=0 // pred_fallthru
    _

// kernel: lenet_generator_forward.6
$region0: #{lenet_generator_forward.6}
  #allocation0 [shape = 'u32[]', space=smem, size = 0x4, offset = 0x4, fixed_abs, tag = 'smem constant byte address 0x4 - core index']
  #allocation1 [shape = 'u32[144,128]{1,0:T(1,128)}', space=vmem, size = 0x12000, scoped, tag = 'internal scratch']
  %s0 = inlined_call_operand.vmem [shape: bf16[28,128], index: 0, kind: input, shape index: {}]
  %s1 = inlined_call_operand.vmem [shape: bf16[128,128], index: 1, kind: input, shape index: {}]
  %s2 = inlined_call_operand.vmem [shape: f32[28,1], index: 2, kind: input, shape index: {}]
  %s3 = inlined_call_operand.vmem [shape: f32[28,128], index: 3, kind: output, shape index: {}]
  %s4 = sld [smem:[#allocation0]]
  $region22: #{lenet_generator_forward.6} parent=0
    _
  %s6 = ssub.s32 1, %s4
  %s7 = scalar_select 0, %s6, %s4
  // Predicated region
  $region2: #{lenet_generator_forward.6} parent=0 // pred_check
    _
  $region3: #{lenet_generator_forward.6} parent=0 // pred_check_branch
    %9 = sbr.rel (0) target = $region5
  $region4: #{lenet_generator_forward.6} parent=0 // pred_region
    _
  $region5: #{lenet_generator_forward.6} parent=0 // pred_fallthru
    _
  // Predicated region
  $region6: #{lenet_generator_forward.6} parent=0 // pred_check
    _
  $region7: #{lenet_generator_forward.6} parent=0 // pred_check_branch
    %11 = sbr.rel (0) target = $region9
  $region8: #{lenet_generator_forward.6} parent=0 // pred_region
    _
  $region9: #{lenet_generator_forward.6} parent=0 // pred_fallthru
    _
  // Predicated region
  $region10: #{lenet_generator_forward.6} parent=0 // pred_check
    _
  $region11: #{lenet_generator_forward.6} parent=0 // pred_check_branch
    %13 = sbr.rel (0) target = $region13
  $region12: #{lenet_generator_forward.6} parent=0 // pred_region
    _
  $region13: #{lenet_generator_forward.6} parent=0 // pred_fallthru
    _
  %v15 = vld [vmem:[%s0] sm:$0xf]
  %v16 = vld [vmem:[%s0 + $0x4] sm:$0xf]
  %v17 = vld [vmem:[%s0 + $0x8] sm:$0xf]
  %v18 = vld [vmem:[%s0 + $0xc] sm:$0x3]
  %v19 = vld [vmem:[%s1] sm:$0xf]
  %v20 = vld [vmem:[%s1 + $0x4] sm:$0xf]
  %v21 = vld [vmem:[%s1 + $0x8] sm:$0xf]
  %v22 = vld [vmem:[%s1 + $0xc] sm:$0xf]
  %v23 = vld [vmem:[%s1 + $0x10] sm:$0xf]
  %v24 = vld [vmem:[%s1 + $0x14] sm:$0xf]
  %v25 = vld [vmem:[%s1 + $0x18] sm:$0xf]
  %v26 = vld [vmem:[%s1 + $0x1c] sm:$0xf]
  %v27 = vld [vmem:[%s1 + $0x20] sm:$0xf]
  %v28 = vld [vmem:[%s1 + $0x24] sm:$0xf]
  %v29 = vld [vmem:[%s1 + $0x28] sm:$0xf]
  %v30 = vld [vmem:[%s1 + $0x2c] sm:$0xf]
  %v31 = vld [vmem:[%s1 + $0x30] sm:$0xf]
  %v32 = vld [vmem:[%s1 + $0x34] sm:$0xf]
  %v33 = vld [vmem:[%s1 + $0x38] sm:$0xf]
  %v34 = vld [vmem:[%s1 + $0x3c] sm:$0xf]
  %v35 = vld [vmem:[%s2] sm:$0xff]
  %v36 = vld [vmem:[%s2 + $0x8] sm:$0xff]
  %v37 = vld [vmem:[%s2 + $0x10] sm:$0xff]
  %v38 = vld [vmem:[%s2 + $0x18] sm:$0xf]
  %40 = vset.pattern.permute.xlu0 0
  %41 = vperm.xlu0 %40, %v35
  %v42 = vpop.permute.xlu0 %41
  %45 = vset.pattern.permute.xlu0 0
  %46 = vperm.xlu0 %45, %v36
  %v47 = vpop.permute.xlu0 %46
  %50 = vset.pattern.permute.xlu0 0
  %51 = vperm.xlu0 %50, %v37
  %v52 = vpop.permute.xlu0 %51
  %55 = vset.pattern.permute.xlu0 0
  %56 = vperm.xlu0 %55, %v38
  %v57 = vpop.permute.xlu0 %56
  %v63 = vunpack.c.l.b16 %v15
  %v64 = vunpack.c.l.b16 %v16
  %v65 = vunpack.c.l.b16 %v17
  %v66 = vunpack.c.l.b16 %v18
  %v67 = vpack.c.b16 %v64, %v63
  %v68 = vpack.c.b16 %v66, %v65
  %v87 = vunpack.c.l.b16 %v19
  %v88 = vunpack.c.l.b16 %v20
  %v89 = vunpack.c.l.b16 %v21
  %v90 = vunpack.c.l.b16 %v22
  %v91 = vunpack.c.l.b16 %v23
  %v92 = vunpack.c.l.b16 %v24
  %v93 = vunpack.c.l.b16 %v25
  %v94 = vunpack.c.l.b16 %v26
  %v95 = vunpack.c.l.b16 %v27
  %v96 = vunpack.c.l.b16 %v28
  %v97 = vunpack.c.l.b16 %v29
  %v98 = vunpack.c.l.b16 %v30
  %v99 = vunpack.c.l.b16 %v31
  %v100 = vunpack.c.l.b16 %v32
  %v101 = vunpack.c.l.b16 %v33
  %v102 = vunpack.c.l.b16 %v34
  %v103 = vpack.c.b16 %v88, %v87
  %v104 = vpack.c.b16 %v90, %v89
  %v105 = vpack.c.b16 %v92, %v91
  %v106 = vpack.c.b16 %v94, %v93
  %v107 = vpack.c.b16 %v96, %v95
  %v108 = vpack.c.b16 %v98, %v97
  %v109 = vpack.c.b16 %v100, %v99
  %v110 = vpack.c.b16 %v102, %v101
  %119 = vmatprep.subr.bf16.mxu0 0
  %120 = vmatpush1.bf16.msra.mxu0 %v103
  %121 = vmatprep.subr.bf16.mxu0 0
  %122 = vmatpush1.bf16.msra.mxu0 %v104
  %123 = vmatprep.subr.bf16.mxu0 0
  %124 = vmatpush1.bf16.msra.mxu0 %v105
  %125 = vmatprep.subr.bf16.mxu0 0
  %126 = vmatpush1.bf16.msra.mxu0 %v106
  %127 = vmatprep.subr.bf16.mxu0 0
  %128 = vmatpush1.bf16.msra.mxu0 %v107
  %129 = vmatprep.subr.bf16.mxu0 0
  %130 = vmatpush1.bf16.msra.mxu0 %v108
  %131 = vmatprep.subr.bf16.mxu0 0
  %132 = vmatpush1.bf16.msra.mxu0 %v109
  %133 = vmatprep.subr.bf16.mxu0 0
  %134 = vmatpush1.bf16.msra.mxu0 %v110
  %135 = vmatprep.subr.bf16.mxu0 0
  %136 = vmatpush1.bf16.msra.mxu0 0
  %137 = vmatprep.subr.bf16.mxu0 0
  %138 = vmatpush1.bf16.msra.mxu0 0
  %139 = vmatprep.subr.bf16.mxu0 0
  %140 = vmatpush1.bf16.msra.mxu0 0
  %141 = vmatprep.subr.bf16.mxu0 0
  %142 = vmatpush1.bf16.msra.mxu0 0
  %143 = vmatprep.subr.bf16.mxu0 0
  %144 = vmatpush1.bf16.msra.mxu0 0
  %145 = vmatprep.subr.bf16.mxu0 0
  %146 = vmatpush1.bf16.msra.mxu0 0
  %147 = vmatprep.subr.bf16.mxu0 0
  %148 = vmatpush1.bf16.msra.mxu0 0
  %149 = vmatprep.subr.bf16.mxu0 0
  %150 = vmatpush1.bf16.msra.mxu0 0
  %151 = vmatprep.mubr.bf16.mxu0 0
  %152 = vmatmul.mubr.bf16.gmra.mrb[0].mxu0 %v67
  %v153 = vpop.f32.mrb[0].mxu0
  %v154 = vadd.f32 %v42, %v153
  %v155 = vpop.f32.mrb[0].mxu0
  %v156 = vpop.f32.mrb[0].mxu0
  %v157 = vadd.f32 %v47, %v156
  %v158 = vpop.f32.mrb[0].mxu0
  %159 = vmatprep.mubr.bf16.mxu0 0
  %160 = vmatmul.mubr.bf16.gmra.mrb[0].mxu0 %v68
  %v161 = vpop.f32.mrb[0].mxu0
  %v162 = vadd.f32 %v52, %v161
  %v163 = vpop.f32.mrb[0].mxu0
  %v164 = vpop.f32.mrb[0].mxu0
  %v165 = vadd.f32 %v57, %v164
  %v166 = vpop.f32.mrb[0].mxu0
  %167 = vdwg.mxu0
  %v168 = vmax.f32 %v154, 0.0
  %v169 = vmax.f32 %v157, 0.0
  %v170 = vmax.f32 %v162, 0.0
  %v171 = vmax.f32 %v165, 0.0
  %172 = vst [vmem:[%s3] sm:$0xff] %v168
  %173 = vst [vmem:[%s3 + $0x8] sm:$0xff] %v169
  %174 = vst [vmem:[%s3 + $0x10] sm:$0xff] %v170
  %175 = vst [vmem:[%s3 + $0x18] sm:$0xf] %v171
  // Predicated region
  $region14: #{lenet_generator_forward.6} parent=0 // pred_check
    _
  $region15: #{lenet_generator_forward.6} parent=0 // pred_check_branch
    %177 = sbr.rel (0) target = $region17
  $region16: #{lenet_generator_forward.6} parent=0 // pred_region
    _
  $region17: #{lenet_generator_forward.6} parent=0 // pred_fallthru
    _
  // Predicated region
  $region18: #{lenet_generator_forward.6} parent=0 // pred_check
    _
  $region19: #{lenet_generator_forward.6} parent=0 // pred_check_branch
    %179 = sbr.rel (0) target = $region21
  $region20: #{lenet_generator_forward.6} parent=0 // pred_region
    _
  $region21: #{lenet_generator_forward.6} parent=0 // pred_fallthru
    _

// kernel: tile.12
$region0: #{tile.12}
  #allocation0 [shape = 's32[1]{0}', space=sflag, size = 0x4, scoped, tag = 'scoped memory for tile.12']
  %s0 = inlined_call_operand.vmem [shape: f32[6], index: 0, kind: input, shape index: {}]
  %s1 = inlined_call_operand.vmem [shape: f32[4,6], index: 1, kind: output, shape index: {}]
  // Predicated region
  $region2: #{tile.12} parent=0 // pred_check
    _
  $region3: #{tile.12} parent=0 // pred_check_branch
    %3 = sbr.rel (0) target = $region5
  $region4: #{tile.12} parent=0 // pred_region
    _
  $region5: #{tile.12} parent=0 // pred_fallthru
    _
  %v4 = vld [vmem:[%s0] ss:$0 sm:$0xff]
  %5 = vst [vmem:[%s1] sm:$0xf] %v4

// kernel: tile.0
$region0: #{tile.0}
  %s0 = inlined_call_operand.vmem [shape: f32[4,6], index: 0, kind: input, shape index: {}]
  %s1 = inlined_call_operand.vmem [shape: f32[24,1], index: 1, kind: output, shape index: {}]
  $region1: #{tile.0} parent=0
    #allocation0 [shape = 'u8[4096]{0}', space=vmem, size = 0x1000, scoped, tag = 'scoped mem for input reshape']
    %s3 = sshllo.u32 0, 4
    %v4 = vld [vmem:[%s0] sm:%s3]
    %5 = vst [vmem:[#allocation0] sm:%s3] %v4
    %v6 = vld [vmem:[#allocation0] sm:$0xf]
    %vm7 = vcmask 7168
    %8 = vst.msk [vmem:[%s1] ss:$6 sm:$0xf] %vm7, %v6
    %v9 = vld [vmem:[#allocation0] sm:$0xf]
    %10 = vrot.lane.b32.xlu0 %v9, 127
    %v11 = vpop.permute.xlu0 %10
    %vm12 = vcmask 7168
    %s13 = scalar_lea.vmem %s1, 1
    %14 = vst.msk [vmem:[%s13] ss:$6 sm:$0xf] %vm12, %v11
    %v15 = vld [vmem:[#allocation0] sm:$0xf]
    %16 = vrot.lane.b32.xlu0 %v15, 126
    %v17 = vpop.permute.xlu0 %16
    %vm18 = vcmask 7168
    %s19 = scalar_lea.vmem %s1, 2
    %20 = vst.msk [vmem:[%s19] ss:$6 sm:$0xf] %vm18, %v17
    %v21 = vld [vmem:[#allocation0] sm:$0xf]
    %22 = vrot.lane.b32.xlu0 %v21, 125
    %v23 = vpop.permute.xlu0 %22
    %vm24 = vcmask 7168
    %s25 = scalar_lea.vmem %s1, 3
    %26 = vst.msk [vmem:[%s25] ss:$6 sm:$0xf] %vm24, %v23
    %v27 = vld [vmem:[#allocation0] sm:$0xf]
    %28 = vrot.lane.b32.xlu0 %v27, 124
    %v29 = vpop.permute.xlu0 %28
    %vm30 = vcmask 7168
    %s31 = scalar_lea.vmem %s1, 4
    %32 = vst.msk [vmem:[%s31] ss:$6 sm:$0xf] %vm30, %v29
    %v33 = vld [vmem:[#allocation0] sm:$0xf]
    %34 = vrot.lane.b32.xlu0 %v33, 123
    %v35 = vpop.permute.xlu0 %34
    %vm36 = vcmask 7168
    %s37 = scalar_lea.vmem %s1, 5
    %38 = vst.msk [vmem:[%s37] ss:$6 sm:$0xf] %vm36, %v35

// kernel: lenet_generator_forward.7
$region0: #{lenet_generator_forward.7}
  #allocation0 [shape = 'u32[]', space=smem, size = 0x4, offset = 0x4, fixed_abs, tag = 'smem constant byte address 0x4 - core index']
  #allocation1 [shape = 'u32[144,128]{1,0:T(1,128)}', space=vmem, size = 0x12000, scoped, tag = 'internal scratch']
  %s0 = inlined_call_operand.vmem [shape: bf16[24,256], index: 0, kind: input, shape index: {}]
  %s1 = inlined_call_operand.vmem [shape: bf16[256,128], index: 1, kind: input, shape index: {}]
  %s2 = inlined_call_operand.vmem [shape: f32[24,1], index: 2, kind: input, shape index: {}]
  %s3 = inlined_call_operand.vmem [shape: f32[24,128], index: 3, kind: output, shape index: {}]
  %s4 = sld [smem:[#allocation0]]
  $region22: #{lenet_generator_forward.7} parent=0
    _
  %s6 = ssub.s32 1, %s4
  %s7 = scalar_select 0, %s6, %s4
  // Predicated region
  $region2: #{lenet_generator_forward.7} parent=0 // pred_check
    _
  $region3: #{lenet_generator_forward.7} parent=0 // pred_check_branch
    %9 = sbr.rel (0) target = $region5
  $region4: #{lenet_generator_forward.7} parent=0 // pred_region
    _
  $region5: #{lenet_generator_forward.7} parent=0 // pred_fallthru
    _
  // Predicated region
  $region6: #{lenet_generator_forward.7} parent=0 // pred_check
    _
  $region7: #{lenet_generator_forward.7} parent=0 // pred_check_branch
    %11 = sbr.rel (0) target = $region9
  $region8: #{lenet_generator_forward.7} parent=0 // pred_region
    _
  $region9: #{lenet_generator_forward.7} parent=0 // pred_fallthru
    _
  // Predicated region
  $region10: #{lenet_generator_forward.7} parent=0 // pred_check
    _
  $region11: #{lenet_generator_forward.7} parent=0 // pred_check_branch
    %13 = sbr.rel (0) target = $region13
  $region12: #{lenet_generator_forward.7} parent=0 // pred_region
    _
  $region13: #{lenet_generator_forward.7} parent=0 // pred_fallthru
    _
  %v15 = vld [vmem:[%s0] sm:$0xff]
  %v16 = vld [vmem:[%s0 + $0x8] sm:$0xff]
  %v17 = vld [vmem:[%s0 + $0x10] sm:$0xff]
  %v18 = vld [vmem:[%s1] sm:$0xf]
  %v19 = vld [vmem:[%s1 + $0x4] sm:$0xf]
  %v20 = vld [vmem:[%s1 + $0x8] sm:$0xf]
  %v21 = vld [vmem:[%s1 + $0xc] sm:$0xf]
  %v22 = vld [vmem:[%s1 + $0x10] sm:$0xf]
  %v23 = vld [vmem:[%s1 + $0x14] sm:$0xf]
  %v24 = vld [vmem:[%s1 + $0x18] sm:$0xf]
  %v25 = vld [vmem:[%s1 + $0x1c] sm:$0xf]
  %v26 = vld [vmem:[%s1 + $0x20] sm:$0xf]
  %v27 = vld [vmem:[%s1 + $0x24] sm:$0xf]
  %v28 = vld [vmem:[%s1 + $0x28] sm:$0xf]
  %v29 = vld [vmem:[%s1 + $0x2c] sm:$0xf]
  %v30 = vld [vmem:[%s1 + $0x30] sm:$0xf]
  %v31 = vld [vmem:[%s1 + $0x34] sm:$0xf]
  %v32 = vld [vmem:[%s1 + $0x38] sm:$0xf]
  %v33 = vld [vmem:[%s1 + $0x3c] sm:$0xf]
  %v34 = vld [vmem:[%s1 + $0x40] sm:$0xf]
  %v35 = vld [vmem:[%s1 + $0x44] sm:$0xf]
  %v36 = vld [vmem:[%s1 + $0x48] sm:$0xf]
  %v37 = vld [vmem:[%s1 + $0x4c] sm:$0xf]
  %v38 = vld [vmem:[%s1 + $0x50] sm:$0xf]
  %v39 = vld [vmem:[%s1 + $0x54] sm:$0xf]
  %v40 = vld [vmem:[%s1 + $0x58] sm:$0xf]
  %v41 = vld [vmem:[%s1 + $0x5c] sm:$0xf]
  %v42 = vld [vmem:[%s1 + $0x60] sm:$0xf]
  %v43 = vld [vmem:[%s1 + $0x64] sm:$0xf]
  %v44 = vld [vmem:[%s1 + $0x68] sm:$0xf]
  %v45 = vld [vmem:[%s1 + $0x6c] sm:$0xf]
  %v46 = vld [vmem:[%s1 + $0x70] sm:$0xf]
  %v47 = vld [vmem:[%s1 + $0x74] sm:$0xf]
  %v48 = vld [vmem:[%s1 + $0x78] sm:$0xf]
  %v49 = vld [vmem:[%s1 + $0x7c] sm:$0xf]
  %v50 = vld [vmem:[%s2] sm:$0xff]
  %v51 = vld [vmem:[%s2 + $0x8] sm:$0xff]
  %v52 = vld [vmem:[%s2 + $0x10] sm:$0xff]
  %54 = vset.pattern.permute.xlu0 0
  %55 = vperm.xlu0 %54, %v50
  %v56 = vpop.permute.xlu0 %55
  %59 = vset.pattern.permute.xlu0 0
  %60 = vperm.xlu0 %59, %v51
  %v61 = vpop.permute.xlu0 %60
  %64 = vset.pattern.permute.xlu0 0
  %65 = vperm.xlu0 %64, %v52
  %v66 = vpop.permute.xlu0 %65
  %v71 = vunpack.c.l.b16 %v15
  %v72 = vunpack.c.h.b16 %v15
  %v73 = vunpack.c.l.b16 %v16
  %v74 = vunpack.c.h.b16 %v16
  %v75 = vunpack.c.l.b16 %v17
  %v76 = vunpack.c.h.b16 %v17
  %v77 = vpack.c.b16 %v73, %v71
  %v78 = vpack.c.b16 %v74, %v72
  %v79 = vpack.c.b16 %v75, %v75
  %v80 = vpack.c.b16 %v76, %v76
  %v117 = vunpack.c.l.b16 %v18
  %v118 = vunpack.c.l.b16 %v19
  %v119 = vunpack.c.l.b16 %v20
  %v120 = vunpack.c.l.b16 %v21
  %v121 = vunpack.c.l.b16 %v22
  %v122 = vunpack.c.l.b16 %v23
  %v123 = vunpack.c.l.b16 %v24
  %v124 = vunpack.c.l.b16 %v25
  %v125 = vunpack.c.l.b16 %v26
  %v126 = vunpack.c.l.b16 %v27
  %v127 = vunpack.c.l.b16 %v28
  %v128 = vunpack.c.l.b16 %v29
  %v129 = vunpack.c.l.b16 %v30
  %v130 = vunpack.c.l.b16 %v31
  %v131 = vunpack.c.l.b16 %v32
  %v132 = vunpack.c.l.b16 %v33
  %v133 = vunpack.c.l.b16 %v34
  %v134 = vunpack.c.l.b16 %v35
  %v135 = vunpack.c.l.b16 %v36
  %v136 = vunpack.c.l.b16 %v37
  %v137 = vunpack.c.l.b16 %v38
  %v138 = vunpack.c.l.b16 %v39
  %v139 = vunpack.c.l.b16 %v40
  %v140 = vunpack.c.l.b16 %v41
  %v141 = vunpack.c.l.b16 %v42
  %v142 = vunpack.c.l.b16 %v43
  %v143 = vunpack.c.l.b16 %v44
  %v144 = vunpack.c.l.b16 %v45
  %v145 = vunpack.c.l.b16 %v46
  %v146 = vunpack.c.l.b16 %v47
  %v147 = vunpack.c.l.b16 %v48
  %v148 = vunpack.c.l.b16 %v49
  %v149 = vpack.c.b16 %v118, %v117
  %v150 = vpack.c.b16 %v120, %v119
  %v151 = vpack.c.b16 %v122, %v121
  %v152 = vpack.c.b16 %v124, %v123
  %v153 = vpack.c.b16 %v126, %v125
  %v154 = vpack.c.b16 %v128, %v127
  %v155 = vpack.c.b16 %v130, %v129
  %v156 = vpack.c.b16 %v132, %v131
  %v157 = vpack.c.b16 %v134, %v133
  %v158 = vpack.c.b16 %v136, %v135
  %v159 = vpack.c.b16 %v138, %v137
  %v160 = vpack.c.b16 %v140, %v139
  %v161 = vpack.c.b16 %v142, %v141
  %v162 = vpack.c.b16 %v144, %v143
  %v163 = vpack.c.b16 %v146, %v145
  %v164 = vpack.c.b16 %v148, %v147
  %181 = vmatprep.subr.bf16.mxu0 0
  %182 = vmatpush1.bf16.msra.mxu0 %v149
  %183 = vmatprep.subr.bf16.mxu0 0
  %184 = vmatpush1.bf16.msra.mxu0 %v150
  %185 = vmatprep.subr.bf16.mxu0 0
  %186 = vmatpush1.bf16.msra.mxu0 %v151
  %187 = vmatprep.subr.bf16.mxu0 0
  %188 = vmatpush1.bf16.msra.mxu0 %v152
  %189 = vmatprep.subr.bf16.mxu0 0
  %190 = vmatpush1.bf16.msra.mxu0 %v153
  %191 = vmatprep.subr.bf16.mxu0 0
  %192 = vmatpush1.bf16.msra.mxu0 %v154
  %193 = vmatprep.subr.bf16.mxu0 0
  %194 = vmatpush1.bf16.msra.mxu0 %v155
  %195 = vmatprep.subr.bf16.mxu0 0
  %196 = vmatpush1.bf16.msra.mxu0 %v156
  %197 = vmatprep.subr.bf16.mxu0 0
  %198 = vmatpush1.bf16.msra.mxu0 %v157
  %199 = vmatprep.subr.bf16.mxu0 0
  %200 = vmatpush1.bf16.msra.mxu0 %v158
  %201 = vmatprep.subr.bf16.mxu0 0
  %202 = vmatpush1.bf16.msra.mxu0 %v159
  %203 = vmatprep.subr.bf16.mxu0 0
  %204 = vmatpush1.bf16.msra.mxu0 %v160
  %205 = vmatprep.subr.bf16.mxu0 0
  %206 = vmatpush1.bf16.msra.mxu0 %v161
  %207 = vmatprep.subr.bf16.mxu0 0
  %208 = vmatpush1.bf16.msra.mxu0 %v162
  %209 = vmatprep.subr.bf16.mxu0 0
  %210 = vmatpush1.bf16.msra.mxu0 %v163
  %211 = vmatprep.subr.bf16.mxu0 0
  %212 = vmatpush1.bf16.msra.mxu0 %v164
  %213 = vmatprep.mubr.bf16.mxu0 %v78
  %214 = vmatmul.mubr.bf16.gmra.mrb[0].mxu0 %v77
  %v215 = vpop.f32.mrb[0].mxu0
  %v216 = vadd.f32 %v56, %v215
  %v217 = vpop.f32.mrb[0].mxu0
  %v218 = vpop.f32.mrb[0].mxu0
  %v219 = vadd.f32 %v61, %v218
  %v220 = vpop.f32.mrb[0].mxu0
  %221 = vmatprep.mubr.bf16.mxu0 %v80
  %222 = vmatmul.mubr.bf16.gmra.mrb[0].mxu0 %v79
  %v223 = vpop.f32.mrb[0].mxu0
  %v224 = vadd.f32 %v66, %v223
  %v225 = vpop.f32.mrb[0].mxu0
  %v226 = vpop.f32.mrb[0].mxu0
  %v227 = vpop.f32.mrb[0].mxu0
  %228 = vdwg.mxu0
  %v229 = vmax.f32 %v216, 0.0
  %v230 = vmax.f32 %v219, 0.0
  %v231 = vmax.f32 %v224, 0.0
  %232 = vst [vmem:[%s3] sm:$0xff] %v229
  %233 = vst [vmem:[%s3 + $0x8] sm:$0xff] %v230
  %234 = vst [vmem:[%s3 + $0x10] sm:$0xff] %v231
  // Predicated region
  $region14: #{lenet_generator_forward.7} parent=0 // pred_check
    _
  $region15: #{lenet_generator_forward.7} parent=0 // pred_check_branch
    %236 = sbr.rel (0) target = $region17
  $region16: #{lenet_generator_forward.7} parent=0 // pred_region
    _
  $region17: #{lenet_generator_forward.7} parent=0 // pred_fallthru
    _
  // Predicated region
  $region18: #{lenet_generator_forward.7} parent=0 // pred_check
    _
  $region19: #{lenet_generator_forward.7} parent=0 // pred_check_branch
    %238 = sbr.rel (0) target = $region21
  $region20: #{lenet_generator_forward.7} parent=0 // pred_region
    _
  $region21: #{lenet_generator_forward.7} parent=0 // pred_fallthru
    _

// kernel: tile.17
$region0: #{tile.17}
  #allocation0 [shape = 's32[1]{0}', space=sflag, size = 0x4, scoped, tag = 'scoped memory for tile.17']
  %s0 = inlined_call_operand.<no memory space> [shape: f32[], index: 0, kind: input, shape index: {}]
  %s1 = inlined_call_operand.vmem [shape: f32[4,1], index: 1, kind: output, shape index: {}]
  %v2 = vstv %s0
  %3 = vst [vmem:[%s1] sm:$0xf] %v2

// kernel: lenet_generator_forward.8
$region0: #{lenet_generator_forward.8}
  #allocation0 [shape = 'u32[]', space=smem, size = 0x4, offset = 0x4, fixed_abs, tag = 'smem constant byte address 0x4 - core index']
  #allocation1 [shape = 'u32[144,128]{1,0:T(1,128)}', space=vmem, size = 0x12000, scoped, tag = 'internal scratch']
  %s0 = inlined_call_operand.vmem [shape: bf16[4,128], index: 0, kind: input, shape index: {}]
  %s1 = inlined_call_operand.vmem [shape: bf16[128,128], index: 1, kind: input, shape index: {}]
  %s2 = inlined_call_operand.vmem [shape: f32[4,1], index: 2, kind: input, shape index: {}]
  %s3 = inlined_call_operand.vmem [shape: f32[4,128], index: 3, kind: output, shape index: {}]
  %s4 = sld [smem:[#allocation0]]
  $region22: #{lenet_generator_forward.8} parent=0
    _
  %s6 = ssub.s32 1, %s4
  %s7 = scalar_select 0, %s6, %s4
  // Predicated region
  $region2: #{lenet_generator_forward.8} parent=0 // pred_check
    _
  $region3: #{lenet_generator_forward.8} parent=0 // pred_check_branch
    %9 = sbr.rel (0) target = $region5
  $region4: #{lenet_generator_forward.8} parent=0 // pred_region
    _
  $region5: #{lenet_generator_forward.8} parent=0 // pred_fallthru
    _
  // Predicated region
  $region6: #{lenet_generator_forward.8} parent=0 // pred_check
    _
  $region7: #{lenet_generator_forward.8} parent=0 // pred_check_branch
    %11 = sbr.rel (0) target = $region9
  $region8: #{lenet_generator_forward.8} parent=0 // pred_region
    _
  $region9: #{lenet_generator_forward.8} parent=0 // pred_fallthru
    _
  // Predicated region
  $region10: #{lenet_generator_forward.8} parent=0 // pred_check
    _
  $region11: #{lenet_generator_forward.8} parent=0 // pred_check_branch
    %13 = sbr.rel (0) target = $region13
  $region12: #{lenet_generator_forward.8} parent=0 // pred_region
    _
  $region13: #{lenet_generator_forward.8} parent=0 // pred_fallthru
    _
  %v15 = vld [vmem:[%s0] sm:$0x3]
  %v16 = vld [vmem:[%s1] sm:$0xf]
  %v17 = vld [vmem:[%s1 + $0x4] sm:$0xf]
  %v18 = vld [vmem:[%s1 + $0x8] sm:$0xf]
  %v19 = vld [vmem:[%s1 + $0xc] sm:$0xf]
  %v20 = vld [vmem:[%s1 + $0x10] sm:$0xf]
  %v21 = vld [vmem:[%s1 + $0x14] sm:$0xf]
  %v22 = vld [vmem:[%s1 + $0x18] sm:$0xf]
  %v23 = vld [vmem:[%s1 + $0x1c] sm:$0xf]
  %v24 = vld [vmem:[%s1 + $0x20] sm:$0xf]
  %v25 = vld [vmem:[%s1 + $0x24] sm:$0xf]
  %v26 = vld [vmem:[%s1 + $0x28] sm:$0xf]
  %v27 = vld [vmem:[%s1 + $0x2c] sm:$0xf]
  %v28 = vld [vmem:[%s1 + $0x30] sm:$0xf]
  %v29 = vld [vmem:[%s1 + $0x34] sm:$0xf]
  %v30 = vld [vmem:[%s1 + $0x38] sm:$0xf]
  %v31 = vld [vmem:[%s1 + $0x3c] sm:$0xf]
  %v32 = vld [vmem:[%s2] sm:$0xf]
  %34 = vset.pattern.permute.xlu0 0
  %35 = vperm.xlu0 %34, %v32
  %v36 = vpop.permute.xlu0 %35
  %v54 = vunpack.c.l.b16 %v16
  %v55 = vunpack.c.l.b16 %v17
  %v56 = vunpack.c.l.b16 %v18
  %v57 = vunpack.c.l.b16 %v19
  %v58 = vunpack.c.l.b16 %v20
  %v59 = vunpack.c.l.b16 %v21
  %v60 = vunpack.c.l.b16 %v22
  %v61 = vunpack.c.l.b16 %v23
  %v62 = vunpack.c.l.b16 %v24
  %v63 = vunpack.c.l.b16 %v25
  %v64 = vunpack.c.l.b16 %v26
  %v65 = vunpack.c.l.b16 %v27
  %v66 = vunpack.c.l.b16 %v28
  %v67 = vunpack.c.l.b16 %v29
  %v68 = vunpack.c.l.b16 %v30
  %v69 = vunpack.c.l.b16 %v31
  %v70 = vpack.c.b16 %v55, %v54
  %v71 = vpack.c.b16 %v57, %v56
  %v72 = vpack.c.b16 %v59, %v58
  %v73 = vpack.c.b16 %v61, %v60
  %v74 = vpack.c.b16 %v63, %v62
  %v75 = vpack.c.b16 %v65, %v64
  %v76 = vpack.c.b16 %v67, %v66
  %v77 = vpack.c.b16 %v69, %v68
  %86 = vmatprep.subr.bf16.mxu0 0
  %87 = vmatpush1.bf16.msra.mxu0 %v70
  %88 = vmatprep.subr.bf16.mxu0 0
  %89 = vmatpush1.bf16.msra.mxu0 %v71
  %90 = vmatprep.subr.bf16.mxu0 0
  %91 = vmatpush1.bf16.msra.mxu0 %v72
  %92 = vmatprep.subr.bf16.mxu0 0
  %93 = vmatpush1.bf16.msra.mxu0 %v73
  %94 = vmatprep.subr.bf16.mxu0 0
  %95 = vmatpush1.bf16.msra.mxu0 %v74
  %96 = vmatprep.subr.bf16.mxu0 0
  %97 = vmatpush1.bf16.msra.mxu0 %v75
  %98 = vmatprep.subr.bf16.mxu0 0
  %99 = vmatpush1.bf16.msra.mxu0 %v76
  %100 = vmatprep.subr.bf16.mxu0 0
  %101 = vmatpush1.bf16.msra.mxu0 %v77
  %102 = vmatprep.subr.bf16.mxu0 0
  %103 = vmatpush1.bf16.msra.mxu0 0
  %104 = vmatprep.subr.bf16.mxu0 0
  %105 = vmatpush1.bf16.msra.mxu0 0
  %106 = vmatprep.subr.bf16.mxu0 0
  %107 = vmatpush1.bf16.msra.mxu0 0
  %108 = vmatprep.subr.bf16.mxu0 0
  %109 = vmatpush1.bf16.msra.mxu0 0
  %110 = vmatprep.subr.bf16.mxu0 0
  %111 = vmatpush1.bf16.msra.mxu0 0
  %112 = vmatprep.subr.bf16.mxu0 0
  %113 = vmatpush1.bf16.msra.mxu0 0
  %114 = vmatprep.subr.bf16.mxu0 0
  %115 = vmatpush1.bf16.msra.mxu0 0
  %116 = vmatprep.subr.bf16.mxu0 0
  %117 = vmatpush1.bf16.msra.mxu0 0
  %118 = vmatprep.mubr.bf16.mxu0 0
  %119 = vmatmul.mubr.bf16.gmra.mrb[0].mxu0 %v15
  %v120 = vpop.f32.mrb[0].mxu0
  %v121 = vadd.f32 %v36, %v120
  %v122 = vpop.f32.mrb[0].mxu0
  %v123 = vpop.f32.mrb[0].mxu0
  %v124 = vpop.f32.mrb[0].mxu0
  %125 = vdwg.mxu0
  %v126 = vmax.f32 %v121, 0.0
  %127 = vst [vmem:[%s3] sm:$0xf] %v126
  // Predicated region
  $region14: #{lenet_generator_forward.8} parent=0 // pred_check
    _
  $region15: #{lenet_generator_forward.8} parent=0 // pred_check_branch
    %129 = sbr.rel (0) target = $region17
  $region16: #{lenet_generator_forward.8} parent=0 // pred_region
    _
  $region17: #{lenet_generator_forward.8} parent=0 // pred_fallthru
    _
  // Predicated region
  $region18: #{lenet_generator_forward.8} parent=0 // pred_check
    _
  $region19: #{lenet_generator_forward.8} parent=0 // pred_check_branch
    %131 = sbr.rel (0) target = $region21
  $region20: #{lenet_generator_forward.8} parent=0 // pred_region
    _
  $region21: #{lenet_generator_forward.8} parent=0 // pred_fallthru
    _

// kernel: lenet_generator_forward.9
$region0: #{lenet_generator_forward.9}
  #allocation0 [shape = 'u32[]', space=smem, size = 0x4, offset = 0x4, fixed_abs, tag = 'smem constant byte address 0x4 - core index']
  #allocation1 [shape = 'u32[144,128]{1,0:T(1,128)}', space=vmem, size = 0x12000, scoped, tag = 'internal scratch']
  %s0 = inlined_call_operand.vmem [shape: f32[2,4,256], index: 0, kind: input, shape index: {}]
  %s1 = inlined_call_operand.vmem [shape: f32[2,1,256], index: 1, kind: input, shape index: {}]
  %s2 = inlined_call_operand.vmem [shape: f32[2,4,256], index: 2, kind: output, shape index: {}]
  %s3 = sld [smem:[#allocation0]]
  $region41: #{lenet_generator_forward.9} parent=0
    _
  %s5 = ssub.s32 1, %s3
  %s6 = scalar_select 0, %s5, %s3
  loop: start=0, step=1, limit=4
  $region2: #{lenet_generator_forward.9} parent=0 // loop_pre_header
    _
  $region3: #{lenet_generator_forward.9} parent=0 // loop_header
    %s8 = sphi 0, %s12
    %p9 = scmp.ge.s32.totalorder %s8, 4
    %s18 = sphi 0, %s20
    %s21 = sphi 0, %s18
    %s22 = sphi 0, %s21
    %s38 = sphi 0, %s22
    %s44 = sphi 0, %s46
    %s47 = sphi 0, %s44
    %s48 = sphi 0, %s47
    %s64 = sphi 0, %s48
    %s70 = sphi 0, %s72
    %s73 = sphi 0, %s70
    %s74 = sphi 0, %s73
    %s90 = sphi 0, %s74
  $region4: #{lenet_generator_forward.9} parent=0 // loop_header_branch
    %11 = sbr.rel (%p9) target = $region8
  $region5: #{lenet_generator_forward.9} parent=0 // loop_body
    %s13 = ssub.s32 %s8, 1
    %s14 = ssub.s32 %s8, 2
    %s15 = sadd.s32 %s8, 1
    %s16 = ssub.s32 %s8, %s15
    %p17 = scmp.eq.s32.totalorder %s16, 0
    %s19 = sadd.s32 %s18, 1
    %s20 = scalar_select %p17, %s18, %s19
    %p23 = pneg %p17
    %p24 = scmp.eq.s32.totalorder %s8, 1
    %p25 = por %p23, %p24
    %p26 = scmp.ne.s32.totalorder %s18, %s21
    %p27 = scmp.eq.s32.totalorder %s8, 0
    %p28 = por %p26, %p27
    %p29 = scmp.ne.s32.totalorder %s18, %s21
    %p30 = scmp.eq.s32.totalorder %s13, 1
    %p31 = por %p29, %p30
    %p32 = scmp.ne.s32.totalorder %s21, %s22
    %p33 = scmp.eq.s32.totalorder %s13, 0
    %p34 = por %p32, %p33
    %p35 = scmp.ne.s32.totalorder %s21, %s22
    %p36 = scmp.eq.s32.totalorder %s14, 1
    %p37 = por %p35, %p36
    %p39 = scmp.ne.s32.totalorder %s22, %s38
    %p40 = scmp.eq.s32.totalorder %s14, 0
    %p41 = por %p39, %p40
    %s42 = ssub.s32 %s8, %s15
    %p43 = scmp.eq.s32.totalorder %s42, 0
    %s45 = sadd.s32 %s44, 1
    %s46 = scalar_select %p43, %s44, %s45
    %p49 = pneg %p43
    %p50 = scmp.eq.s32.totalorder %s8, 1
    %p51 = por %p49, %p50
    %p52 = scmp.ne.s32.totalorder %s44, %s47
    %p53 = scmp.eq.s32.totalorder %s8, 0
    %p54 = por %p52, %p53
    %p55 = scmp.ne.s32.totalorder %s44, %s47
    %p56 = scmp.eq.s32.totalorder %s13, 1
    %p57 = por %p55, %p56
    %p58 = scmp.ne.s32.totalorder %s47, %s48
    %p59 = scmp.eq.s32.totalorder %s13, 0
    %p60 = por %p58, %p59
    %p61 = scmp.ne.s32.totalorder %s47, %s48
    %p62 = scmp.eq.s32.totalorder %s14, 1
    %p63 = por %p61, %p62
    %p65 = scmp.ne.s32.totalorder %s48, %s64
    %p66 = scmp.eq.s32.totalorder %s14, 0
    %p67 = por %p65, %p66
    %s68 = ssub.s32 %s8, %s15
    %p69 = scmp.eq.s32.totalorder %s68, 0
    %s71 = sadd.s32 %s70, 1
    %s72 = scalar_select %p69, %s70, %s71
    %p75 = pneg %p69
    %p76 = scmp.eq.s32.totalorder %s8, 1
    %p77 = por %p75, %p76
    %p78 = scmp.ne.s32.totalorder %s70, %s73
    %p79 = scmp.eq.s32.totalorder %s8, 0
    %p80 = por %p78, %p79
    %p81 = scmp.ne.s32.totalorder %s70, %s73
    %p82 = scmp.eq.s32.totalorder %s13, 1
    %p83 = por %p81, %p82
    %p84 = scmp.ne.s32.totalorder %s73, %s74
    %p85 = scmp.eq.s32.totalorder %s13, 0
    %p86 = por %p84, %p85
    %p87 = scmp.ne.s32.totalorder %s73, %s74
    %p88 = scmp.eq.s32.totalorder %s14, 1
    %p89 = por %p87, %p88
    %p91 = scmp.ne.s32.totalorder %s74, %s90
    %p92 = scmp.eq.s32.totalorder %s14, 0
    %p93 = por %p91, %p92
    %p94 = scmp.le.s32.totalorder 1, %s8
    %p95 = scmp.lt.s32.totalorder %s8, 3
    %p96 = pnand %p94, %p95
    %p97 = pneg %p96
    // Predicated region
    $region9: #{lenet_generator_forward.9} parent=5 // pred_check
      _
    $region10: #{lenet_generator_forward.9} parent=5 // pred_check_branch
      %99 = sbr.rel (%p96) target = $region12
    $region11: #{lenet_generator_forward.9} parent=5 // pred_region
      %s100 = ssub.s32 %s8, 1
    $region12: #{lenet_generator_forward.9} parent=5 // pred_fallthru
      _
    %p101 = scmp.lt.s32.totalorder %s8, 2
    // Predicated region
    $region13: #{lenet_generator_forward.9} parent=5 // pred_check
      %p102 = pneg %p101
    $region14: #{lenet_generator_forward.9} parent=5 // pred_check_branch
      %104 = sbr.rel (%p102) target = $region16
    $region15: #{lenet_generator_forward.9} parent=5 // pred_region
      // Predicated region
      $region17: #{lenet_generator_forward.9} parent=15 // pred_check
        %p105 = pneg %p28
      $region18: #{lenet_generator_forward.9} parent=15 // pred_check_branch
        %107 = sbr.rel (%p105) target = $region20
      $region19: #{lenet_generator_forward.9} parent=15 // pred_region
        %p108 = scmp.lt.s32.totalorder %s8, 1
        %s109 = scalar_select %p108, %s8, 1
        %s110 = smul.addr %s109, 2
        %s111 = smul.addr %s110, 4
        %s112 = scalar_lea.vmem %s0, %s111
      $region20: #{lenet_generator_forward.9} parent=15 // pred_fallthru
        _
      // Predicated region
      $region21: #{lenet_generator_forward.9} parent=15 // pred_check
        %p113 = pneg %p54
      $region22: #{lenet_generator_forward.9} parent=15 // pred_check_branch
        %115 = sbr.rel (%p113) target = $region24
      $region23: #{lenet_generator_forward.9} parent=15 // pred_region
        %p116 = scmp.lt.s32.totalorder %s8, 1
        %s117 = scalar_select %p116, %s8, 1
        %s118 = smul.addr %s117, 2
        %s119 = scalar_lea.vmem %s1, %s118
      $region24: #{lenet_generator_forward.9} parent=15 // pred_fallthru
        _
    $region16: #{lenet_generator_forward.9} parent=5 // pred_fallthru
      _
    %p120 = scmp.le.s32.totalorder 1, %s8
    %p121 = scmp.lt.s32.totalorder %s8, 3
    %p122 = pnand %p120, %p121
    %p123 = pneg %p122
    // Predicated region
    $region25: #{lenet_generator_forward.9} parent=5 // pred_check
      _
    $region26: #{lenet_generator_forward.9} parent=5 // pred_check_branch
      %125 = sbr.rel (%p122) target = $region28
    $region27: #{lenet_generator_forward.9} parent=5 // pred_region
      %s126 = ssub.s32 %s8, 1
      %p127 = scmp.lt.s32.totalorder %s13, 1
      %s128 = scalar_select %p127, %s13, 1
      %s129 = smul.addr %s128, 2
      %s130 = smul.addr %s129, 4
      %s131 = scalar_lea.vmem %s0, %s130
      %p132 = pneg %p34
      %p133 = pneg %p31
      %p134 = scmp.lt.s32.totalorder %s13, 1
      %s135 = scalar_select %p134, %s13, 1
      %s136 = smul.addr %s135, 2
      %s137 = scalar_lea.vmem %s1, %s136
      %p138 = pneg %p60
      %p139 = pneg %p57
      %p140 = pneg %p86
      %p141 = pneg %p83
      %p142 = scmp.lt.s32.totalorder %s13, 1
      %s143 = scalar_select %p142, %s13, 1
      %s144 = smul.addr %s143, 2
      %s145 = smul.addr %s144, 4
      %s146 = scalar_lea.vmem %s2, %s145
      %p147 = scmp.lt.s32.totalorder %s13, 1
      %s148 = scalar_select %p147, %s13, 1
      %s149 = smul.addr %s148, 2
      %s150 = smul.addr %s149, 4
      %s151 = scalar_lea.vmem %s0, %s150
      %p152 = scmp.lt.s32.totalorder %s13, 1
      %s153 = scalar_select %p152, %s13, 1
      %s154 = smul.addr %s153, 2
      %s155 = scalar_lea.vmem %s1, %s154
      %p156 = scmp.lt.s32.totalorder %s13, 1
      %s157 = scalar_select %p156, %s13, 1
      %s158 = smul.addr %s157, 2
      %s159 = smul.addr %s158, 4
      %s160 = scalar_lea.vmem %s2, %s159
      %v161 = vld [vmem:[%s151] sm:$0xff]
      %v162 = vld [vmem:[%s155] sm:$0x3]
      %v164 = vlaneseq
      %v165 = vshrl.u32 %v164, 7
      %v166 = vsub.s32 0, %v165
      %v167 = vrot.slane %v162, %v166
      %v168 = vlaneseq
      %v169 = vshrl.u32 %v168, 7
      %v170 = vsub.s32 1, %v169
      %v171 = vrot.slane %v162, %v170
      %v172 = vcombine.low %v167, %v171
      %v174 = vadd.f32 %v161, %v172
      %175 = vst [vmem:[%s160] sm:$0xff] %v174
      %p176 = scmp.lt.s32.totalorder %s13, 1
      %s177 = scalar_select %p176, %s13, 1
      %s178 = smul.addr %s177, 2
      %s179 = smul.addr %s178, 4
      %s180 = scalar_lea.vmem %s2, %s179
      // Predicated region
      $region29: #{lenet_generator_forward.9} parent=27 // pred_check
        %p181 = pneg %p83
      $region30: #{lenet_generator_forward.9} parent=27 // pred_check_branch
        %183 = sbr.rel (%p181) target = $region32
      $region31: #{lenet_generator_forward.9} parent=27 // pred_region
        _
      $region32: #{lenet_generator_forward.9} parent=27 // pred_fallthru
        _
    $region28: #{lenet_generator_forward.9} parent=5 // pred_fallthru
      _
    %p184 = scmp.le.s32.totalorder 2, %s8
    // Predicated region
    $region33: #{lenet_generator_forward.9} parent=5 // pred_check
      %p185 = pneg %p184
    $region34: #{lenet_generator_forward.9} parent=5 // pred_check_branch
      %187 = sbr.rel (%p185) target = $region36
    $region35: #{lenet_generator_forward.9} parent=5 // pred_region
      %s188 = ssub.s32 %s8, 2
      // Predicated region
      $region37: #{lenet_generator_forward.9} parent=35 // pred_check
        %p189 = pneg %p89
      $region38: #{lenet_generator_forward.9} parent=35 // pred_check_branch
        %191 = sbr.rel (%p189) target = $region40
      $region39: #{lenet_generator_forward.9} parent=35 // pred_region
        %p192 = scmp.lt.s32.totalorder %s14, 1
        %s193 = scalar_select %p192, %s14, 1
        %s194 = smul.addr %s193, 2
        %s195 = smul.addr %s194, 4
        %s196 = scalar_lea.vmem %s2, %s195
      $region40: #{lenet_generator_forward.9} parent=35 // pred_fallthru
        _
    $region36: #{lenet_generator_forward.9} parent=5 // pred_fallthru
      _
  $region6: #{lenet_generator_forward.9} parent=0 // loop_footer
    %s12 = sadd.s32 1, %s8
  $region7: #{lenet_generator_forward.9} parent=0 // loop_footer_branch
    %7 = sbr.rel target = $region3
  $region8: #{lenet_generator_forward.9} parent=0 // loop_exit
    _

</llo_original>
